<compile_context>
chip_gen: v6e
topology: v6e:2x2x1
jax: 0.10.0
libtpu: 0.0.40
codegen_flags: <defaults>
</compile_context>

<pallas_src>
import math
import functools

import jax
import jax.numpy as jnp
from jax.experimental import pallas as pl
from jax.experimental.pallas import tpu as pltpu


LANE = 128
SUBLANE = 8


def _round_up(n, m):
    return ((n + m - 1) // m) * m


def _pad_gate_lanes(a, h, hp):
    """Pad (..., 3*h) -> (..., 3*hp), zero-padding each gate's lane block."""
    if hp == h:
        return a
    lead = a.shape[:-1]
    a3 = a.reshape(lead + (3, h))
    a3 = jnp.pad(a3, [(0, 0)] * len(lead) + [(0, 0), (0, hp - h)])
    return a3.reshape(lead + (3 * hp,))


# ----------------------------------------------------------------------------
# Parameter preparation (done once per model, not per step)
# ----------------------------------------------------------------------------
def prepare_params(params, hidden_size, matmul_dtype=None):
    """Pad gate dimension to a 128-lane multiple and optionally cast weights.

    params = (wx, bx, wh, bh) with shapes
      wx: (D_in, 3H), bx: (1, 3H), wh: (H, 3H), bh: (1, 3H)
    Returns (wx_p, bx_p, wh_p, bh_p, Hp) where each gate occupies a full
    Hp-lane block (Hp = round_up(H, 128)). Biases stay float32.
    """
    wx, bx, wh, bh = params
    H = hidden_size
    Hp = max(LANE, _round_up(H, LANE))

    wx_p = _pad_gate_lanes(wx, H, Hp)                       # (D_in, 3*Hp)
    wh_p = _pad_gate_lanes(wh, H, Hp)                       # (H, 3*Hp)
    wh_p = jnp.pad(wh_p, ((0, Hp - H), (0, 0)))             # (Hp, 3*Hp)
    bx_p = _pad_gate_lanes(bx, H, Hp).astype(jnp.float32)   # (1, 3*Hp)
    bh_p = _pad_gate_lanes(bh, H, Hp).astype(jnp.float32)   # (1, 3*Hp)

    if matmul_dtype is not None:
        wx_p = wx_p.astype(matmul_dtype)
        wh_p = wh_p.astype(matmul_dtype)
    return wx_p, bx_p, wh_p, bh_p, Hp


# ----------------------------------------------------------------------------
# Single-step kernel (module forward)
# ----------------------------------------------------------------------------
def _gru_cell_kernel(x_ref, h_ref, v_ref, wx_ref, bx_ref, wh_ref, bh_ref,
                     hy_ref, vy_ref, *, hp, mu, epsilon):
    cd = wx_ref.dtype                      # MXU input dtype (bf16 or f32)
    x = x_ref[...]
    h = h_ref[...].astype(jnp.float32)
    v = v_ref[...]                         # float32 momentum carry

    # x2h / h2h linear parts; accumulate in f32 on the MXU.
    gate_x = jnp.dot(x.astype(cd), wx_ref[...],
                     preferred_element_type=jnp.float32) + bx_ref[...]
    gate_h_lin = jnp.dot(h.astype(cd), wh_ref[...],
                         preferred_element_type=jnp.float32) + bh_ref[...]

    vy = mu * v + epsilon * gate_x
    gate_h = gate_h_lin + vy

    # Gate slices are at lane-tile-aligned offsets (multiples of 128).
    i_r, i_i, i_n = gate_x[:, :hp], gate_x[:, hp:2 * hp], gate_x[:, 2 * hp:]
    h_r, h_i, h_n = gate_h[:, :hp], gate_h[:, hp:2 * hp], gate_h[:, 2 * hp:]

    resetgate = jax.nn.sigmoid(i_r + h_r)
    inputgate = jax.nn.sigmoid(i_i + h_i)
    newgate = jnp.tanh(i_n + resetgate * h_n)
    hy = newgate + inputgate * (h - newgate)

    hy_ref[...] = hy.astype(hy_ref.dtype)
    vy_ref[...] = vy.astype(vy_ref.dtype)


def gru_cell_forward(x, hidden, v, prepared, *, mu, epsilon, block_b=256):
    """One GRUCell step. prepared = prepare_params(...)."""
    wx_p, bx_p, wh_p, bh_p, Hp = prepared
    B, d_in = x.shape
    H = hidden.shape[1]

    # Batch tiling: sublane-aligned tiles; grid axis is embarrassingly parallel.
    BM = _round_up(min(block_b, _round_up(B, SUBLANE)), SUBLANE)
    Bp = _round_up(B, BM)

    x_p = jnp.pad(x, ((0, Bp - B), (0, 0)))
    h_p = jnp.pad(hidden, ((0, Bp - B), (0, Hp - H)))
    v_p = jnp.pad(_pad_gate_lanes(v, H, Hp),
                  ((0, Bp - B), (0, 0))).astype(jnp.float32)

    kernel = functools.partial(_gru_cell_kernel, hp=Hp,
                               mu=float(mu), epsilon=float(epsilon))

    hy_p, vy_p = pl.pallas_call(
        kernel,
        out_shape=(
            jax.ShapeDtypeStruct((Bp, Hp), x.dtype),
            jax.ShapeDtypeStruct((Bp, 3 * Hp), jnp.float32),
        ),
        grid=(Bp // BM,),
        in_specs=[
            pl.BlockSpec((BM, d_in), lambda i: (i, 0)),        # x
            pl.BlockSpec((BM, Hp), lambda i: (i, 0)),          # hidden
            pl.BlockSpec((BM, 3 * Hp), lambda i: (i, 0)),      # v
            pl.BlockSpec((d_in, 3 * Hp), lambda i: (0, 0)),    # Wx (resident)
            pl.BlockSpec((1, 3 * Hp), lambda i: (0, 0)),       # bx
            pl.BlockSpec((Hp, 3 * Hp), lambda i: (0, 0)),      # Wh (resident)
            pl.BlockSpec((1, 3 * Hp), lambda i: (0, 0)),       # bh
        ],
        out_specs=(
            pl.BlockSpec((BM, Hp), lambda i: (i, 0)),          # hy (lane-dense)
            pl.BlockSpec((BM, 3 * Hp), lambda i: (i, 0)),      # vy (lane-dense)
        ),
        compiler_params=pltpu.CompilerParams(
            dimension_semantics=("parallel",)),
    )(x_p, h_p, v_p, wx_p, bx_p, wh_p, bh_p)

    hy = hy_p[:B, :H]
    vy = vy_p[:B].reshape(B, 3, Hp)[:, :, :H].reshape(B, 3 * H)
    return hy, vy


# ----------------------------------------------------------------------------
# Sequence kernel: one pallas_call for T steps, weights resident in VMEM,
# h/v carried in VMEM scratch between grid iterations.
# ----------------------------------------------------------------------------
def _gru_seq_kernel(xs_ref, h0_ref, v0_ref, wx_ref, bx_ref, wh_ref, bh_ref,
                    hs_ref, vT_ref, h_scr, v_scr, *, hp, mu, epsilon):
    t = pl.program_id(0)
    cd = wx_ref.dtype

    @pl.when(t == 0)
    def _():
        h_scr[...] = h0_ref[...].astype(jnp.float32)
        v_scr[...] = v0_ref[...]

    x = xs_ref[0]                    # (Bp, D_in) for this timestep
    h = h_scr[...]
    v = v_scr[...]

    gate_x = jnp.dot(x.astype(cd), wx_ref[...],
                     preferred_element_type=jnp.float32) + bx_ref[...]
    gate_h_lin = jnp.dot(h.astype(cd), wh_ref[...],
                         preferred_element_type=jnp.float32) + bh_ref[...]

    vy = mu * v + epsilon * gate_x
    gate_h = gate_h_lin + vy

    i_r, i_i, i_n = gate_x[:, :hp], gate_x[:, hp:2 * hp], gate_x[:, 2 * hp:]
    h_r, h_i, h_n = gate_h[:, :hp], gate_h[:, hp:2 * hp], gate_h[:, 2 * hp:]

    resetgate = jax.nn.sigmoid(i_r + h_r)
    inputgate = jax.nn.sigmoid(i_i + h_i)
    newgate = jnp.tanh(i_n + resetgate * h_n)
    hy = newgate + inputgate * (h - newgate)

    h_scr[...] = hy                  # float32 carries across grid steps
    v_scr[...] = vy
    hs_ref[0] = hy.astype(hs_ref.dtype)

    @pl.when(t == pl.num_programs(0) - 1)
    def _():
        vT_ref[...] = vy.astype(vT_ref.dtype)


def gru_sequence_forward(xs, hidden, v, prepared, *, mu, epsilon):
    """Runs T GRU steps inside a single kernel. Returns (hs[T,B,H], v_final)."""
    wx_p, bx_p, wh_p, bh_p, Hp = prepared
    T, B, d_in = xs.shape
    H = hidden.shape[1]
    Bp = _round_up(B, SUBLANE)

    xs_p = jnp.pad(xs, ((0, 0), (0, Bp - B), (0, 0)))
    h_p = jnp.pad(hidden, ((0, Bp - B), (0, Hp - H)))
    v_p = jnp.pad(_pad_gate_lanes(v, H, Hp),
                  ((0, Bp - B), (0, 0))).astype(jnp.float32)

    kernel = functools.partial(_gru_seq_kernel, hp=Hp,
                               mu=float(mu), epsilon=float(epsilon))

    hs_p, vT_p = pl.pallas_call(
        kernel,
        out_shape=(
            jax.ShapeDtypeStruct((T, Bp, Hp), xs.dtype),
            jax.ShapeDtypeStruct((Bp, 3 * Hp), jnp.float32),
        ),
        grid=(T,),
        in_specs=[
            pl.BlockSpec((1, Bp, d_in), lambda t: (t, 0, 0)),   # x_t
            pl.BlockSpec((Bp, Hp), lambda t: (0, 0)),           # h0
            pl.BlockSpec((Bp, 3 * Hp), lambda t: (0, 0)),       # v0
            pl.BlockSpec((d_in, 3 * Hp), lambda t: (0, 0)),     # Wx (resident)
            pl.BlockSpec((1, 3 * Hp), lambda t: (0, 0)),        # bx
            pl.BlockSpec((Hp, 3 * Hp), lambda t: (0, 0)),       # Wh (resident)
            pl.BlockSpec((1, 3 * Hp), lambda t: (0, 0)),        # bh
        ],
        out_specs=(
            pl.BlockSpec((1, Bp, Hp), lambda t: (t, 0, 0)),     # h_t
            pl.BlockSpec((Bp, 3 * Hp), lambda t: (0, 0)),       # v_T
        ),
        scratch_shapes=[
            pltpu.VMEM((Bp, Hp), jnp.float32),                  # h carry
            pltpu.VMEM((Bp, 3 * Hp), jnp.float32),              # v carry
        ],
        compiler_params=pltpu.CompilerParams(
            dimension_semantics=("arbitrary",)),                # recurrence
    )(xs_p, h_p, v_p, wx_p, bx_p, wh_p, bh_p)

    hs = hs_p[:, :B, :H]
    vT = vT_p[:B].reshape(B, 3, Hp)[:, :, :H].reshape(B, 3 * H)
    return hs, vT


# ----------------------------------------------------------------------------
# Params / reference
# ----------------------------------------------------------------------------
def init_params(key, input_size, hidden_size, dtype=jnp.float32):
    """Mirrors reset_parameters(): U(-std, std), std = 1/sqrt(hidden_size)."""
    std = 1.0 / math.sqrt(hidden_size)
    k1, k2, k3, k4 = jax.random.split(key, 4)
    # nn.Linear stores weight (3H, D_in); we keep the transposed (D_in, 3H).
    wx = jax.random.uniform(k1, (input_size, 3 * hidden_size), dtype, -std, std)
    bx = jax.random.uniform(k2, (1, 3 * hidden_size), dtype, -std, std)
    wh = jax.random.uniform(k3, (hidden_size, 3 * hidden_size), dtype, -std, std)
    bh = jax.random.uniform(k4, (1, 3 * hidden_size), dtype, -std, std)
    return wx, bx, wh, bh


def reference_forward(x, hidden, v, params, *, mu, epsilon):
    """Pure-JAX reference matching the PyTorch module semantics."""
    wx, bx, wh, bh = params
    gate_x = x @ wx + bx
    vy = mu * v + epsilon * gate_x
    gate_h = hidden @ wh + bh + vy
    H = hidden.shape[1]
    i_r, i_i, i_n = gate_x[:, :H], gate_x[:, H:2 * H], gate_x[:, 2 * H:]
    h_r, h_i, h_n = gate_h[:, :H], gate_h[:, H:2 * H], gate_h[:, 2 * H:]
    resetgate = jax.nn.sigmoid(i_r + h_r)
    inputgate = jax.nn.sigmoid(i_i + h_i)
    newgate = jnp.tanh(i_n + resetgate * h_n)
    hy = newgate + inputgate * (hidden - newgate)
    return hy, vy


if __name__ == "__main__":
    B = 8
    INPUT_SIZE = 16
    HIDDEN_SIZE = 32
    MU = 0.9
    EPSILON = 0.1
    T = 6

    key = jax.random.PRNGKey(0)
    kx, kh, kv, kp, ks = jax.random.split(key, 5)

    x = jax.random.normal(kx, (B, INPUT_SIZE), jnp.float32)
    hidden = jax.random.normal(kh, (B, HIDDEN_SIZE), jnp.float32)
    v = jax.random.normal(kv, (B, 3 * HIDDEN_SIZE), jnp.float32)
    params = init_params(kp, INPUT_SIZE, HIDDEN_SIZE)

    # --- single step, f32 MXU inputs (bit-close to reference) ---------------
    prep_f32 = prepare_params(params, HIDDEN_SIZE, matmul_dtype=jnp.float32)
    hy, vy = gru_cell_forward(x, hidden, v, prep_f32, mu=MU, epsilon=EPSILON)
    jax.block_until_ready((hy, vy))
    hy_ref, vy_ref = reference_forward(x, hidden, v, params, mu=MU, epsilon=EPSILON)
    assert jnp.allclose(hy, hy_ref, atol=1e-5, rtol=1e-5)
    assert jnp.allclose(vy, vy_ref, atol=1e-5, rtol=1e-5)

    # --- single step, bf16 MXU inputs with f32 accumulation -----------------
    prep_bf16 = prepare_params(params, HIDDEN_SIZE, matmul_dtype=jnp.bfloat16)
    hy_b, vy_b = gru_cell_forward(x, hidden, v, prep_bf16, mu=MU, epsilon=EPSILON)
    jax.block_until_ready((hy_b, vy_b))
    assert jnp.allclose(hy_b, hy_ref, atol=3e-2, rtol=3e-2)
    assert jnp.allclose(vy_b, vy_ref, atol=3e-2, rtol=3e-2)

    # --- T-step sequence: one kernel launch, weights resident in VMEM -------
    xs = jax.random.normal(ks, (T, B, INPUT_SIZE), jnp.float32)
    hs, vT = gru_sequence_forward(xs, hidden, v, prep_f32, mu=MU, epsilon=EPSILON)
    jax.block_until_ready((hs, vT))

    def scan_step(carry, xt):
        h_c, v_c = carry
        hy_t, vy_t = reference_forward(xt, h_c, v_c, params, mu=MU, epsilon=EPSILON)
        return (hy_t, vy_t), hy_t

    (_, v_last), hs_ref = jax.lax.scan(scan_step, (hidden, v), xs)
    assert jnp.allclose(hs, hs_ref, atol=1e-4, rtol=1e-4)
    assert jnp.allclose(vT, v_last, atol=1e-4, rtol=1e-4)

    print("KERNEL_OK")
</pallas_src>

<mosaic_0001>
module attributes {stable_mosaic.version = 11 : i64} {
  func.func @_gru_cell_kernel(%arg0: i32, %arg1: memref<8x16xf32, #tpu.memory_space<vmem>>, %arg2: memref<8x128xf32, #tpu.memory_space<vmem>>, %arg3: memref<8x384xf32, #tpu.memory_space<vmem>>, %arg4: memref<16x384xf32, #tpu.memory_space<vmem>>, %arg5: memref<1x384xf32, #tpu.memory_space<vmem>>, %arg6: memref<128x384xf32, #tpu.memory_space<vmem>>, %arg7: memref<1x384xf32, #tpu.memory_space<vmem>>, %arg8: memref<8x128xf32, #tpu.memory_space<vmem>>, %arg9: memref<8x384xf32, #tpu.memory_space<vmem>>) attributes {dimension_semantics = [#tpu.dimension_semantics<parallel>], iteration_bounds = array<i64: 1>, scalar_prefetch = 0 : i64, scratch_operands = 0 : i64, tpu.core_type = #tpu.core_type<tc>, window_params = [{transform_indices = @transform_0, window_bounds = array<i64: 8, 16>}, {transform_indices = @transform_1, window_bounds = array<i64: 8, 128>}, {transform_indices = @transform_2, window_bounds = array<i64: 8, 384>}, {pipeline_mode = #tpu.pipeline_mode<synchronous>, transform_indices = @transform_3, window_bounds = array<i64: 16, 384>}, {pipeline_mode = #tpu.pipeline_mode<synchronous>, transform_indices = @transform_4, window_bounds = array<i64: 1, 384>}, {pipeline_mode = #tpu.pipeline_mode<synchronous>, transform_indices = @transform_5, window_bounds = array<i64: 128, 384>}, {pipeline_mode = #tpu.pipeline_mode<synchronous>, transform_indices = @transform_6, window_bounds = array<i64: 1, 384>}, {transform_indices = @transform_7, window_bounds = array<i64: 8, 128>}, {transform_indices = @transform_8, window_bounds = array<i64: 8, 384>}]} {
    %c0 = arith.constant 0 : index
    %c0_0 = arith.constant 0 : index
    %0 = vector.load %arg1[%c0, %c0_0] : memref<8x16xf32, #tpu.memory_space<vmem>>, vector<8x16xf32>
    %c0_1 = arith.constant 0 : index
    %c0_2 = arith.constant 0 : index
    %1 = vector.load %arg2[%c0_1, %c0_2] : memref<8x128xf32, #tpu.memory_space<vmem>>, vector<8x128xf32>
    %c0_3 = arith.constant 0 : index
    %c0_4 = arith.constant 0 : index
    %2 = vector.load %arg3[%c0_3, %c0_4] : memref<8x384xf32, #tpu.memory_space<vmem>>, vector<8x384xf32>
    %c0_5 = arith.constant 0 : index
    %c0_6 = arith.constant 0 : index
    %3 = vector.load %arg4[%c0_5, %c0_6] : memref<16x384xf32, #tpu.memory_space<vmem>>, vector<16x384xf32>
    %cst = arith.constant dense<0.000000e+00> : vector<8x384xf32>
    %4 = tpu.matmul %0, %3, %cst {dimension_numbers = #tpu.dot_dimension_numbers<[1], [0], [0], [1], [0, 0, 1, 1], [], []>} : vector<8x16xf32>, vector<16x384xf32>, vector<8x384xf32> -> vector<8x384xf32>
    %c0_7 = arith.constant 0 : index
    %c0_8 = arith.constant 0 : index
    %5 = vector.load %arg5[%c0_7, %c0_8] : memref<1x384xf32, #tpu.memory_space<vmem>>, vector<1x384xf32>
    %6 = vector.broadcast %5 : vector<1x384xf32> to vector<8x384xf32>
    %7 = arith.addf %4, %6 : vector<8x384xf32>
    %c0_9 = arith.constant 0 : index
    %c0_10 = arith.constant 0 : index
    %8 = vector.load %arg6[%c0_9, %c0_10] : memref<128x384xf32, #tpu.memory_space<vmem>>, vector<128x384xf32>
    %cst_11 = arith.constant dense<0.000000e+00> : vector<8x384xf32>
    %9 = tpu.matmul %1, %8, %cst_11 {dimension_numbers = #tpu.dot_dimension_numbers<[1], [0], [0], [1], [0, 0, 1, 1], [], []>} : vector<8x128xf32>, vector<128x384xf32>, vector<8x384xf32> -> vector<8x384xf32>
    %c0_12 = arith.constant 0 : index
    %c0_13 = arith.constant 0 : index
    %10 = vector.load %arg7[%c0_12, %c0_13] : memref<1x384xf32, #tpu.memory_space<vmem>>, vector<1x384xf32>
    %11 = vector.broadcast %10 : vector<1x384xf32> to vector<8x384xf32>
    %12 = arith.addf %9, %11 : vector<8x384xf32>
    %cst_14 = arith.constant 0.899999976 : f32
    %13 = vector.broadcast %cst_14 : f32 to vector<8x384xf32>
    %14 = arith.mulf %13, %2 : vector<8x384xf32>
    %cst_15 = arith.constant 1.000000e-01 : f32
    %15 = vector.broadcast %cst_15 : f32 to vector<8x384xf32>
    %16 = arith.mulf %15, %7 : vector<8x384xf32>
    %17 = arith.addf %14, %16 : vector<8x384xf32>
    %18 = arith.addf %12, %17 : vector<8x384xf32>
    %19 = vector.extract_strided_slice %7 {offsets = [0, 0], sizes = [8, 128], strides = [1, 1]} : vector<8x384xf32> to vector<8x128xf32>
    %20 = vector.extract_strided_slice %7 {offsets = [0, 128], sizes = [8, 128], strides = [1, 1]} : vector<8x384xf32> to vector<8x128xf32>
    %21 = vector.extract_strided_slice %7 {offsets = [0, 256], sizes = [8, 128], strides = [1, 1]} : vector<8x384xf32> to vector<8x128xf32>
    %22 = vector.extract_strided_slice %18 {offsets = [0, 0], sizes = [8, 128], strides = [1, 1]} : vector<8x384xf32> to vector<8x128xf32>
    %23 = vector.extract_strided_slice %18 {offsets = [0, 128], sizes = [8, 128], strides = [1, 1]} : vector<8x384xf32> to vector<8x128xf32>
    %24 = vector.extract_strided_slice %18 {offsets = [0, 256], sizes = [8, 128], strides = [1, 1]} : vector<8x384xf32> to vector<8x128xf32>
    %25 = arith.addf %19, %22 : vector<8x128xf32>
    %26 = arith.negf %25 : vector<8x128xf32>
    %27 = math.exp %26 : vector<8x128xf32>
    %cst_16 = arith.constant 1.000000e+00 : f32
    %28 = vector.broadcast %cst_16 : f32 to vector<8x128xf32>
    %29 = arith.addf %28, %27 : vector<8x128xf32>
    %30 = arith.divf %28, %29 : vector<8x128xf32>
    %31 = arith.addf %20, %23 : vector<8x128xf32>
    %32 = arith.negf %31 : vector<8x128xf32>
    %33 = math.exp %32 : vector<8x128xf32>
    %cst_17 = arith.constant 1.000000e+00 : f32
    %34 = vector.broadcast %cst_17 : f32 to vector<8x128xf32>
    %35 = arith.addf %34, %33 : vector<8x128xf32>
    %36 = arith.divf %34, %35 : vector<8x128xf32>
    %37 = arith.mulf %30, %24 : vector<8x128xf32>
    %38 = arith.addf %21, %37 : vector<8x128xf32>
    %39 = math.tanh %38 : vector<8x128xf32>
    %40 = arith.subf %1, %39 : vector<8x128xf32>
    %41 = arith.mulf %36, %40 : vector<8x128xf32>
    %42 = arith.addf %39, %41 : vector<8x128xf32>
    %c0_18 = arith.constant 0 : index
    %c0_19 = arith.constant 0 : index
    %43 = vector.load %arg8[%c0_18, %c0_19] : memref<8x128xf32, #tpu.memory_space<vmem>>, vector<8x128xf32>
    tpu.vector_store %arg8[%c0_18, %c0_19], %42 {strides = array<i32>} : memref<8x128xf32, #tpu.memory_space<vmem>>, vector<8x128xf32>,
    %c0_20 = arith.constant 0 : index
    %c0_21 = arith.constant 0 : index
    %44 = vector.load %arg9[%c0_20, %c0_21] : memref<8x384xf32, #tpu.memory_space<vmem>>, vector<8x384xf32>
    tpu.vector_store %arg9[%c0_20, %c0_21], %17 {strides = array<i32>} : memref<8x384xf32, #tpu.memory_space<vmem>>, vector<8x384xf32>,
    return
  }
  func.func @transform_0(%arg0: i32) -> (i32, i32) {
    %c0_i32 = arith.constant 0 : i32
    %c0_i32_0 = arith.constant 0 : i32
    return %arg0, %c0_i32 : i32, i32
  }
  func.func @transform_1(%arg0: i32) -> (i32, i32) {
    %c0_i32 = arith.constant 0 : i32
    %c0_i32_0 = arith.constant 0 : i32
    return %arg0, %c0_i32 : i32, i32
  }
  func.func @transform_2(%arg0: i32) -> (i32, i32) {
    %c0_i32 = arith.constant 0 : i32
    %c0_i32_0 = arith.constant 0 : i32
    return %arg0, %c0_i32 : i32, i32
  }
  func.func @transform_3(%arg0: i32) -> (i32, i32) {
    %c0_i32 = arith.constant 0 : i32
    %c0_i32_0 = arith.constant 0 : i32
    %c0_i32_1 = arith.constant 0 : i32
    return %c0_i32, %c0_i32_0 : i32, i32
  }
  func.func @transform_4(%arg0: i32) -> (i32, i32) {
    %c0_i32 = arith.constant 0 : i32
    %c0_i32_0 = arith.constant 0 : i32
    %c0_i32_1 = arith.constant 0 : i32
    return %c0_i32, %c0_i32_0 : i32, i32
  }
  func.func @transform_5(%arg0: i32) -> (i32, i32) {
    %c0_i32 = arith.constant 0 : i32
    %c0_i32_0 = arith.constant 0 : i32
    %c0_i32_1 = arith.constant 0 : i32
    return %c0_i32, %c0_i32_0 : i32, i32
  }
  func.func @transform_6(%arg0: i32) -> (i32, i32) {
    %c0_i32 = arith.constant 0 : i32
    %c0_i32_0 = arith.constant 0 : i32
    %c0_i32_1 = arith.constant 0 : i32
    return %c0_i32, %c0_i32_0 : i32, i32
  }
  func.func @transform_7(%arg0: i32) -> (i32, i32) {
    %c0_i32 = arith.constant 0 : i32
    %c0_i32_0 = arith.constant 0 : i32
    return %arg0, %c0_i32 : i32, i32
  }
  func.func @transform_8(%arg0: i32) -> (i32, i32) {
    %c0_i32 = arith.constant 0 : i32
    %c0_i32_0 = arith.constant 0 : i32
    return %arg0, %c0_i32 : i32, i32
  }
}

</mosaic_0001>

<llo_original>
// kernel: tpu_custom_call.1
$region0: #{tpu_custom_call.1}
  #allocation0 [shape = 'u32[]', space=smem, size = 0x4, offset = 0x4, fixed_abs, tag = 'smem constant byte address 0x4 - core index']
  #allocation1 [shape = 'u32[144,128]{1,0:T(1,128)}', space=vmem, size = 0x12000, scoped, tag = 'internal scratch']
  %s0 = inlined_call_operand.hbm [shape: f32[8,16], index: 0, kind: input, shape index: {}]
  %s1 = inlined_call_operand.hbm [shape: f32[8,128], index: 1, kind: input, shape index: {}]
  %s2 = inlined_call_operand.hbm [shape: f32[8,384], index: 2, kind: input, shape index: {}]
  %s3 = inlined_call_operand.hbm [shape: f32[16,384], index: 3, kind: input, shape index: {}]
  %s4 = inlined_call_operand.vmem [shape: f32[1,384], index: 4, kind: input, shape index: {}]
  %s5 = inlined_call_operand.hbm [shape: f32[128,384], index: 5, kind: input, shape index: {}]
  %s6 = inlined_call_operand.vmem [shape: f32[1,384], index: 6, kind: input, shape index: {}]
  %s7 = inlined_call_operand.hbm [shape: f32[8,128], index: 7, kind: output, shape index: {0}]
  %s8 = inlined_call_operand.hbm [shape: f32[8,384], index: 8, kind: output, shape index: {1}]
  %9 = xla_tuple %s7, %s8
  %s10 = sld [smem:[#allocation0]]
  $region66: #{tpu_custom_call.1} parent=0
    _
  %s12 = ssub.s32 1, %s10
  %s13 = scalar_select 0, %s12, %s10
  $region1: #{tpu_custom_call.1} parent=0
    #allocation2 [shape = 'u8[4096]{0}', space=vmem, size = 0x1000, scoped, tag = 'input window, operand 0, single buffered']
    #allocation3 [shape = 's32[1]{0}', space=sflag, size = 0x4, scoped, tag = 'scoped memory for tpu_custom_call.1']
    #allocation4 [shape = 's32[1]{0}', space=sflag, size = 0x4, scoped, tag = 'scoped memory for tpu_custom_call.1']
    #allocation5 [shape = 'u8[4096]{0}', space=vmem, size = 0x1000, scoped, tag = 'input window, operand 1, single buffered']
    #allocation6 [shape = 's32[1]{0}', space=sflag, size = 0x4, scoped, tag = 'scoped memory for tpu_custom_call.1']
    #allocation7 [shape = 'u8[12288]{0}', space=vmem, size = 0x3000, scoped, tag = 'input window, operand 2, single buffered']
    #allocation8 [shape = 'u8[24576]{0}', space=vmem, size = 0x6000, scoped, tag = 'input window, operand 3, single buffered']
    #allocation9 [shape = 's32[1]{0}', space=sflag, size = 0x4, scoped, tag = 'scoped memory for tpu_custom_call.1']
    #allocation10 [shape = 'u8[196608]{0}', space=vmem, size = 0x30000, scoped, tag = 'input window, operand 5, single buffered']
    #allocation11 [shape = 'u8[4096]{0}', space=vmem, size = 0x1000, scoped, tag = 'output window, operand 0, single buffered']
    #allocation12 [shape = 'u8[12288]{0}', space=vmem, size = 0x3000, scoped, tag = 'output window, operand 1, single buffered']
    #allocation13 [shape = 's32[1]{0}', space=sflag, size = 0x4, scoped, tag = 'scoped memory for tpu_custom_call.1']
    %14 = vsyncpa [#allocation3], 0
    %15 = vsyncpa [#allocation6], 0
    %16 = vsyncpa [#allocation9], 0
    %17 = vsyncpa [#allocation4], 0
    %18 = vsyncpa [#allocation13], 0
    // Predicated region
    $region2: #{tpu_custom_call.1} parent=1 // pred_check
      _
    $region3: #{tpu_custom_call.1} parent=1 // pred_check_branch
      %20 = sbr.rel (0) target = $region5
    $region4: #{tpu_custom_call.1} parent=1 // pred_region
      %s22 = ssub.s32 128, 128
      %23 = vsyncadd [#allocation3], %s22
      %s25 = sshll.u32 [#allocation2], 4
      %s26 = int_to_ptr.vmem [resolvable:$true] %s25
      %28 = dma.hbm_to_vmem [thread:$0]  %s0, 128, %s26, [#allocation3]
    $region5: #{tpu_custom_call.1} parent=1 // pred_fallthru
      _
    // Predicated region
    $region6: #{tpu_custom_call.1} parent=1 // pred_check
      _
    $region7: #{tpu_custom_call.1} parent=1 // pred_check_branch
      %30 = sbr.rel (0) target = $region9
    $region8: #{tpu_custom_call.1} parent=1 // pred_region
      %s32 = ssub.s32 128, 128
      %33 = vsyncadd [#allocation6], %s32
      %s35 = sshll.u32 [#allocation5], 4
      %s36 = int_to_ptr.vmem [resolvable:$true] %s35
      %38 = dma.hbm_to_vmem [thread:$0]  %s1, 128, %s36, [#allocation6]
    $region9: #{tpu_custom_call.1} parent=1 // pred_fallthru
      _
    // Predicated region
    $region10: #{tpu_custom_call.1} parent=1 // pred_check
      _
    $region11: #{tpu_custom_call.1} parent=1 // pred_check_branch
      %40 = sbr.rel (0) target = $region13
    $region12: #{tpu_custom_call.1} parent=1 // pred_region
      %s42 = ssub.s32 384, 384
      %43 = vsyncadd [#allocation6], %s42
      %s45 = sshll.u32 [#allocation7], 4
      %s46 = int_to_ptr.vmem [resolvable:$true] %s45
      %48 = dma.hbm_to_vmem [thread:$0]  %s2, 384, %s46, [#allocation6]
    $region13: #{tpu_custom_call.1} parent=1 // pred_fallthru
      _
    // Predicated region
    $region14: #{tpu_custom_call.1} parent=1 // pred_check
      _
    $region15: #{tpu_custom_call.1} parent=1 // pred_check_branch
      %50 = sbr.rel (0) target = $region17
    $region16: #{tpu_custom_call.1} parent=1 // pred_region
      %s52 = ssub.s32 768, 768
      %53 = vsyncadd [#allocation9], %s52
      %s54 = sshll.u32 [#allocation8], 4
      %s55 = int_to_ptr.vmem [resolvable:$true] %s54
      %60 = dma.hbm_to_vmem [thread:$0]  %s3, 768, %s55, [#allocation9], 384, 384, 24
    $region17: #{tpu_custom_call.1} parent=1 // pred_fallthru
      _
    // Predicated region
    $region18: #{tpu_custom_call.1} parent=1 // pred_check
      _
    $region19: #{tpu_custom_call.1} parent=1 // pred_check_branch
      %62 = sbr.rel (0) target = $region21
    $region20: #{tpu_custom_call.1} parent=1 // pred_region
      _
    $region21: #{tpu_custom_call.1} parent=1 // pred_fallthru
      _
    // Predicated region
    $region22: #{tpu_custom_call.1} parent=1 // pred_check
      _
    $region23: #{tpu_custom_call.1} parent=1 // pred_check_branch
      %64 = sbr.rel (0) target = $region25
    $region24: #{tpu_custom_call.1} parent=1 // pred_region
      %s66 = ssub.s32 6144, 6144
      %67 = vsyncadd [#allocation9], %s66
      %s68 = sshll.u32 [#allocation10], 4
      %s69 = int_to_ptr.vmem [resolvable:$true] %s68
      %74 = dma.hbm_to_vmem [thread:$0]  %s5, 6144, %s69, [#allocation9], 384, 384, 24
    $region25: #{tpu_custom_call.1} parent=1 // pred_fallthru
      _
    // Predicated region
    $region26: #{tpu_custom_call.1} parent=1 // pred_check
      _
    $region27: #{tpu_custom_call.1} parent=1 // pred_check_branch
      %76 = sbr.rel (0) target = $region29
    $region28: #{tpu_custom_call.1} parent=1 // pred_region
      _
    $region29: #{tpu_custom_call.1} parent=1 // pred_fallthru
      _
    // Predicated region
    $region30: #{tpu_custom_call.1} parent=1 // pred_check
      _
    $region31: #{tpu_custom_call.1} parent=1 // pred_check_branch
      %78 = sbr.rel (0) target = $region33
    $region32: #{tpu_custom_call.1} parent=1 // pred_region
      %79 = dma.done [#allocation3], 128
    $region33: #{tpu_custom_call.1} parent=1 // pred_fallthru
      _
    // Predicated region
    $region34: #{tpu_custom_call.1} parent=1 // pred_check
      _
    $region35: #{tpu_custom_call.1} parent=1 // pred_check_branch
      %81 = sbr.rel (0) target = $region37
    $region36: #{tpu_custom_call.1} parent=1 // pred_region
      %82 = dma.done [#allocation6], 128
    $region37: #{tpu_custom_call.1} parent=1 // pred_fallthru
      _
    // Predicated region
    $region38: #{tpu_custom_call.1} parent=1 // pred_check
      _
    $region39: #{tpu_custom_call.1} parent=1 // pred_check_branch
      %84 = sbr.rel (0) target = $region41
    $region40: #{tpu_custom_call.1} parent=1 // pred_region
      %85 = dma.done [#allocation6], 384
    $region41: #{tpu_custom_call.1} parent=1 // pred_fallthru
      _
    // Predicated region
    $region42: #{tpu_custom_call.1} parent=1 // pred_check
      _
    $region43: #{tpu_custom_call.1} parent=1 // pred_check_branch
      %87 = sbr.rel (0) target = $region45
    $region44: #{tpu_custom_call.1} parent=1 // pred_region
      %88 = dma.done [#allocation9], 768
    $region45: #{tpu_custom_call.1} parent=1 // pred_fallthru
      _
    // Predicated region
    $region46: #{tpu_custom_call.1} parent=1 // pred_check
      _
    $region47: #{tpu_custom_call.1} parent=1 // pred_check_branch
      %90 = sbr.rel (0) target = $region49
    $region48: #{tpu_custom_call.1} parent=1 // pred_region
      %91 = dma.done [#allocation9], 6144
    $region49: #{tpu_custom_call.1} parent=1 // pred_fallthru
      _
    %v92 = vld [vmem:[#allocation2] sm:$0xff]
    %v93 = vld [vmem:[#allocation5] sm:$0xff]
    %v94 = vld [vmem:[#allocation7] sm:$0xff]
    %v95 = vld [vmem:[#allocation7 + $0x8] sm:$0xff]
    %v96 = vld [vmem:[#allocation7 + $0x10] sm:$0xff]
    %v97 = vld [vmem:[#allocation8] sm:$0xff]
    %v98 = vld [vmem:[#allocation8 + $0x8] sm:$0xff]
    %v99 = vld [vmem:[#allocation8 + $0x10] sm:$0xff]
    %v100 = vld [vmem:[#allocation8 + $0x18] sm:$0xff]
    %v101 = vld [vmem:[#allocation8 + $0x20] sm:$0xff]
    %v102 = vld [vmem:[#allocation8 + $0x28] sm:$0xff]
    %v103 = vld [vmem:[%s4] sm:$0x7]
    %v105 = vlaneseq
    %v106 = vshrl.u32 %v105, 7
    %v107 = vsub.s32 0, %v106
    %v108 = vrot.slane %v103, %v107
    %v109 = vlaneseq
    %v110 = vshrl.u32 %v109, 7
    %v111 = vsub.s32 1, %v110
    %v112 = vrot.slane %v103, %v111
    %v113 = vlaneseq
    %v114 = vshrl.u32 %v113, 7
    %v115 = vsub.s32 2, %v114
    %v116 = vrot.slane %v103, %v115
    %vm120 = vcmask 130048
    %v122 = vsel %vm120, %v92, 0
    %124 = vmatprep.subr.mxu0 0.0
    %125 = vmatpush1.msra.mxu0 0.0
    %126 = vmatprep.subr.mxu0 0.0
    %127 = vmatpush1.msra.mxu0 0.0
    %128 = vmatprep.subr.mxu0 0.0
    %129 = vmatpush1.msra.mxu0 0.0
    %130 = vmatprep.subr.mxu0 0.0
    %131 = vmatpush1.msra.mxu0 0.0
    %132 = vmatprep.subr.mxu0 0.0
    %133 = vmatpush1.msra.mxu0 0.0
    %134 = vmatprep.subr.mxu0 0.0
    %135 = vmatpush1.msra.mxu0 0.0
    %136 = vmatprep.subr.mxu0 0.0
    %137 = vmatpush1.msra.mxu0 0.0
    %138 = vmatprep.subr.mxu0 0.0
    %139 = vmatpush1.msra.mxu0 0.0
    %140 = vmatprep.subr.mxu0 0.0
    %141 = vmatpush1.msra.mxu0 0.0
    %142 = vmatprep.subr.mxu0 0.0
    %143 = vmatpush1.msra.mxu0 0.0
    %144 = vmatprep.subr.mxu0 0.0
    %145 = vmatpush1.msra.mxu0 0.0
    %146 = vmatprep.subr.mxu0 0.0
    %147 = vmatpush1.msra.mxu0 0.0
    %148 = vmatprep.subr.mxu0 0.0
    %149 = vmatpush1.msra.mxu0 0.0
    %150 = vmatprep.subr.mxu0 0.0
    %151 = vmatpush1.msra.mxu0 0.0
    %152 = vmatprep.subr.mxu0 %v101
    %153 = vmatpush1.msra.mxu0 %v100
    %154 = vmatprep.subr.mxu0 %v98
    %155 = vmatpush1.msra.mxu0 %v97
    %156 = vmatprep.subr.mxu0 0.0
    %157 = vmatpush2.msra.mxu0 0.0
    %158 = vmatprep.subr.mxu0 0.0
    %159 = vmatpush2.msra.mxu0 0.0
    %160 = vmatprep.subr.mxu0 0.0
    %161 = vmatpush2.msra.mxu0 0.0
    %162 = vmatprep.subr.mxu0 0.0
    %163 = vmatpush2.msra.mxu0 0.0
    %164 = vmatprep.subr.mxu0 0.0
    %165 = vmatpush2.msra.mxu0 0.0
    %166 = vmatprep.subr.mxu0 0.0
    %167 = vmatpush2.msra.mxu0 0.0
    %168 = vmatprep.subr.mxu0 0.0
    %169 = vmatpush2.msra.mxu0 0.0
    %170 = vmatprep.subr.mxu0 0.0
    %171 = vmatpush2.msra.mxu0 0.0
    %172 = vmatprep.subr.mxu0 0.0
    %173 = vmatpush2.msra.mxu0 0.0
    %174 = vmatprep.subr.mxu0 0.0
    %175 = vmatpush2.msra.mxu0 0.0
    %176 = vmatprep.subr.mxu0 0.0
    %177 = vmatpush2.msra.mxu0 0.0
    %178 = vmatprep.subr.mxu0 0.0
    %179 = vmatpush2.msra.mxu0 0.0
    %180 = vmatprep.subr.mxu0 0.0
    %181 = vmatpush2.msra.mxu0 0.0
    %182 = vmatprep.subr.mxu0 0.0
    %183 = vmatpush2.msra.mxu0 0.0
    %184 = vmatprep.subr.mxu0 0.0
    %185 = vmatpush2.msra.mxu0 0.0
    %186 = vmatprep.subr.mxu0 0.0
    %187 = vmatpush2.msra.mxu0 0.0
    %188 = vmatprep.mubr.f32.mxu0 0.0
    %189 = vmatmul.mubr.f32.gmra.mxu0 %v122
    %v190 = vpop.f32.mrf.mxu0
    %v191 = vadd.f32 %v108, %v190
    %v192 = vpop.f32.mrf.mxu0
    %v193 = vadd.f32 %v112, %v192
    %194 = vdwg.mxu0
    %195 = vmatprep.subr.mxu0 0.0
    %196 = vmatpush1.msra.mxu0 0.0
    %197 = vmatprep.subr.mxu0 0.0
    %198 = vmatpush1.msra.mxu0 0.0
    %199 = vmatprep.subr.mxu0 0.0
    %200 = vmatpush1.msra.mxu0 0.0
    %201 = vmatprep.subr.mxu0 0.0
    %202 = vmatpush1.msra.mxu0 0.0
    %203 = vmatprep.subr.mxu0 0.0
    %204 = vmatpush1.msra.mxu0 0.0
    %205 = vmatprep.subr.mxu0 0.0
    %206 = vmatpush1.msra.mxu0 0.0
    %207 = vmatprep.subr.mxu0 0.0
    %208 = vmatpush1.msra.mxu0 0.0
    %209 = vmatprep.subr.mxu0 0.0
    %210 = vmatpush1.msra.mxu0 0.0
    %211 = vmatprep.subr.mxu0 0.0
    %212 = vmatpush1.msra.mxu0 0.0
    %213 = vmatprep.subr.mxu0 0.0
    %214 = vmatpush1.msra.mxu0 0.0
    %215 = vmatprep.subr.mxu0 0.0
    %216 = vmatpush1.msra.mxu0 0.0
    %217 = vmatprep.subr.mxu0 0.0
    %218 = vmatpush1.msra.mxu0 0.0
    %219 = vmatprep.subr.mxu0 0.0
    %220 = vmatpush1.msra.mxu0 0.0
    %221 = vmatprep.subr.mxu0 0.0
    %222 = vmatpush1.msra.mxu0 0.0
    %223 = vmatprep.subr.mxu0 0.0
    %224 = vmatpush1.msra.mxu0 %v102
    %225 = vmatprep.subr.mxu0 0.0
    %226 = vmatpush1.msra.mxu0 %v99
    %227 = vmatprep.subr.mxu0 0.0
    %228 = vmatpush2.msra.mxu0 0.0
    %229 = vmatprep.subr.mxu0 0.0
    %230 = vmatpush2.msra.mxu0 0.0
    %231 = vmatprep.subr.mxu0 0.0
    %232 = vmatpush2.msra.mxu0 0.0
    %233 = vmatprep.subr.mxu0 0.0
    %234 = vmatpush2.msra.mxu0 0.0
    %235 = vmatprep.subr.mxu0 0.0
    %236 = vmatpush2.msra.mxu0 0.0
    %237 = vmatprep.subr.mxu0 0.0
    %238 = vmatpush2.msra.mxu0 0.0
    %239 = vmatprep.subr.mxu0 0.0
    %240 = vmatpush2.msra.mxu0 0.0
    %241 = vmatprep.subr.mxu0 0.0
    %242 = vmatpush2.msra.mxu0 0.0
    %243 = vmatprep.subr.mxu0 0.0
    %244 = vmatpush2.msra.mxu0 0.0
    %245 = vmatprep.subr.mxu0 0.0
    %246 = vmatpush2.msra.mxu0 0.0
    %247 = vmatprep.subr.mxu0 0.0
    %248 = vmatpush2.msra.mxu0 0.0
    %249 = vmatprep.subr.mxu0 0.0
    %250 = vmatpush2.msra.mxu0 0.0
    %251 = vmatprep.subr.mxu0 0.0
    %252 = vmatpush2.msra.mxu0 0.0
    %253 = vmatprep.subr.mxu0 0.0
    %254 = vmatpush2.msra.mxu0 0.0
    %255 = vmatprep.subr.mxu0 0.0
    %256 = vmatpush2.msra.mxu0 0.0
    %257 = vmatprep.subr.mxu0 0.0
    %258 = vmatpush2.msra.mxu0 0.0
    %259 = vmatprep.mubr.f32.mxu0 0.0
    %260 = vmatmul.mubr.f32.gmra.mxu0 %v122
    %v261 = vpop.f32.mrf.mxu0
    %v262 = vadd.f32 %v116, %v261
    %v263 = vpop.f32.mrf.mxu0
    %264 = vdwg.mxu0
    %v265 = vld [vmem:[#allocation10] sm:$0xff]
    %v266 = vld [vmem:[#allocation10 + $0x8] sm:$0xff]
    %v267 = vld [vmem:[#allocation10 + $0x10] sm:$0xff]
    %v268 = vld [vmem:[#allocation10 + $0x18] sm:$0xff]
    %v269 = vld [vmem:[#allocation10 + $0x20] sm:$0xff]
    %v270 = vld [vmem:[#allocation10 + $0x28] sm:$0xff]
    %v271 = vld [vmem:[#allocation10 + $0x30] sm:$0xff]
    %v272 = vld [vmem:[#allocation10 + $0x38] sm:$0xff]
    %v273 = vld [vmem:[#allocation10 + $0x40] sm:$0xff]
    %v274 = vld [vmem:[#allocation10 + $0x48] sm:$0xff]
    %v275 = vld [vmem:[#allocation10 + $0x50] sm:$0xff]
    %v276 = vld [vmem:[#allocation10 + $0x58] sm:$0xff]
    %v277 = vld [vmem:[#allocation10 + $0x60] sm:$0xff]
    %v278 = vld [vmem:[#allocation10 + $0x68] sm:$0xff]
    %v279 = vld [vmem:[#allocation10 + $0x70] sm:$0xff]
    %v280 = vld [vmem:[#allocation10 + $0x78] sm:$0xff]
    %v281 = vld [vmem:[#allocation10 + $0x80] sm:$0xff]
    %v282 = vld [vmem:[#allocation10 + $0x88] sm:$0xff]
    %v283 = vld [vmem:[#allocation10 + $0x90] sm:$0xff]
    %v284 = vld [vmem:[#allocation10 + $0x98] sm:$0xff]
    %v285 = vld [vmem:[#allocation10 + $0xa0] sm:$0xff]
    %v286 = vld [vmem:[#allocation10 + $0xa8] sm:$0xff]
    %v287 = vld [vmem:[#allocation10 + $0xb0] sm:$0xff]
    %v288 = vld [vmem:[#allocation10 + $0xb8] sm:$0xff]
    %v289 = vld [vmem:[#allocation10 + $0xc0] sm:$0xff]
    %v290 = vld [vmem:[#allocation10 + $0xc8] sm:$0xff]
    %v291 = vld [vmem:[#allocation10 + $0xd0] sm:$0xff]
    %v292 = vld [vmem:[#allocation10 + $0xd8] sm:$0xff]
    %v293 = vld [vmem:[#allocation10 + $0xe0] sm:$0xff]
    %v294 = vld [vmem:[#allocation10 + $0xe8] sm:$0xff]
    %v295 = vld [vmem:[#allocation10 + $0xf0] sm:$0xff]
    %v296 = vld [vmem:[#allocation10 + $0xf8] sm:$0xff]
    %v297 = vld [vmem:[#allocation10 + $0x100] sm:$0xff]
    %v298 = vld [vmem:[#allocation10 + $0x108] sm:$0xff]
    %v299 = vld [vmem:[#allocation10 + $0x110] sm:$0xff]
    %v300 = vld [vmem:[#allocation10 + $0x118] sm:$0xff]
    %v301 = vld [vmem:[#allocation10 + $0x120] sm:$0xff]
    %v302 = vld [vmem:[#allocation10 + $0x128] sm:$0xff]
    %v303 = vld [vmem:[#allocation10 + $0x130] sm:$0xff]
    %v304 = vld [vmem:[#allocation10 + $0x138] sm:$0xff]
    %v305 = vld [vmem:[#allocation10 + $0x140] sm:$0xff]
    %v306 = vld [vmem:[#allocation10 + $0x148] sm:$0xff]
    %v307 = vld [vmem:[#allocation10 + $0x150] sm:$0xff]
    %v308 = vld [vmem:[#allocation10 + $0x158] sm:$0xff]
    %v309 = vld [vmem:[#allocation10 + $0x160] sm:$0xff]
    %v310 = vld [vmem:[#allocation10 + $0x168] sm:$0xff]
    %v311 = vld [vmem:[#allocation10 + $0x170] sm:$0xff]
    %v312 = vld [vmem:[#allocation10 + $0x178] sm:$0xff]
    %v313 = vld [vmem:[%s6] sm:$0x7]
    %v315 = vlaneseq
    %v316 = vshrl.u32 %v315, 7
    %v317 = vsub.s32 0, %v316
    %v318 = vrot.slane %v313, %v317
    %v319 = vlaneseq
    %v320 = vshrl.u32 %v319, 7
    %v321 = vsub.s32 1, %v320
    %v322 = vrot.slane %v313, %v321
    %v323 = vlaneseq
    %v324 = vshrl.u32 %v323, 7
    %v325 = vsub.s32 2, %v324
    %v326 = vrot.slane %v313, %v325
    %330 = vmatprep.subr.mxu0 %v311
    %331 = vmatpush1.msra.mxu0 %v310
    %332 = vmatprep.subr.mxu0 %v308
    %333 = vmatpush1.msra.mxu0 %v307
    %334 = vmatprep.subr.mxu0 %v305
    %335 = vmatpush1.msra.mxu0 %v304
    %336 = vmatprep.subr.mxu0 %v302
    %337 = vmatpush1.msra.mxu0 %v301
    %338 = vmatprep.subr.mxu0 %v299
    %339 = vmatpush1.msra.mxu0 %v298
    %340 = vmatprep.subr.mxu0 %v296
    %341 = vmatpush1.msra.mxu0 %v295
    %342 = vmatprep.subr.mxu0 %v293
    %343 = vmatpush1.msra.mxu0 %v292
    %344 = vmatprep.subr.mxu0 %v290
    %345 = vmatpush1.msra.mxu0 %v289
    %346 = vmatprep.subr.mxu0 %v287
    %347 = vmatpush1.msra.mxu0 %v286
    %348 = vmatprep.subr.mxu0 %v284
    %349 = vmatpush1.msra.mxu0 %v283
    %350 = vmatprep.subr.mxu0 %v281
    %351 = vmatpush1.msra.mxu0 %v280
    %352 = vmatprep.subr.mxu0 %v278
    %353 = vmatpush1.msra.mxu0 %v277
    %354 = vmatprep.subr.mxu0 %v275
    %355 = vmatpush1.msra.mxu0 %v274
    %356 = vmatprep.subr.mxu0 %v272
    %357 = vmatpush1.msra.mxu0 %v271
    %358 = vmatprep.subr.mxu0 %v269
    %359 = vmatpush1.msra.mxu0 %v268
    %360 = vmatprep.subr.mxu0 %v266
    %361 = vmatpush1.msra.mxu0 %v265
    %362 = vmatprep.subr.mxu0 0.0
    %363 = vmatpush2.msra.mxu0 0.0
    %364 = vmatprep.subr.mxu0 0.0
    %365 = vmatpush2.msra.mxu0 0.0
    %366 = vmatprep.subr.mxu0 0.0
    %367 = vmatpush2.msra.mxu0 0.0
    %368 = vmatprep.subr.mxu0 0.0
    %369 = vmatpush2.msra.mxu0 0.0
    %370 = vmatprep.subr.mxu0 0.0
    %371 = vmatpush2.msra.mxu0 0.0
    %372 = vmatprep.subr.mxu0 0.0
    %373 = vmatpush2.msra.mxu0 0.0
    %374 = vmatprep.subr.mxu0 0.0
    %375 = vmatpush2.msra.mxu0 0.0
    %376 = vmatprep.subr.mxu0 0.0
    %377 = vmatpush2.msra.mxu0 0.0
    %378 = vmatprep.subr.mxu0 0.0
    %379 = vmatpush2.msra.mxu0 0.0
    %380 = vmatprep.subr.mxu0 0.0
    %381 = vmatpush2.msra.mxu0 0.0
    %382 = vmatprep.subr.mxu0 0.0
    %383 = vmatpush2.msra.mxu0 0.0
    %384 = vmatprep.subr.mxu0 0.0
    %385 = vmatpush2.msra.mxu0 0.0
    %386 = vmatprep.subr.mxu0 0.0
    %387 = vmatpush2.msra.mxu0 0.0
    %388 = vmatprep.subr.mxu0 0.0
    %389 = vmatpush2.msra.mxu0 0.0
    %390 = vmatprep.subr.mxu0 0.0
    %391 = vmatpush2.msra.mxu0 0.0
    %392 = vmatprep.subr.mxu0 0.0
    %393 = vmatpush2.msra.mxu0 0.0
    %394 = vmatprep.mubr.f32.mxu0 0.0
    %395 = vmatmul.mubr.f32.gmra.mxu0 %v93
    %v396 = vpop.f32.mrf.mxu0
    %v397 = vadd.f32 %v318, %v396
    %v398 = vpop.f32.mrf.mxu0
    %v399 = vadd.f32 %v322, %v398
    %400 = vdwg.mxu0
    %401 = vmatprep.subr.mxu0 0.0
    %402 = vmatpush1.msra.mxu0 %v312
    %403 = vmatprep.subr.mxu0 0.0
    %404 = vmatpush1.msra.mxu0 %v309
    %405 = vmatprep.subr.mxu0 0.0
    %406 = vmatpush1.msra.mxu0 %v306
    %407 = vmatprep.subr.mxu0 0.0
    %408 = vmatpush1.msra.mxu0 %v303
    %409 = vmatprep.subr.mxu0 0.0
    %410 = vmatpush1.msra.mxu0 %v300
    %411 = vmatprep.subr.mxu0 0.0
    %412 = vmatpush1.msra.mxu0 %v297
    %413 = vmatprep.subr.mxu0 0.0
    %414 = vmatpush1.msra.mxu0 %v294
    %415 = vmatprep.subr.mxu0 0.0
    %416 = vmatpush1.msra.mxu0 %v291
    %417 = vmatprep.subr.mxu0 0.0
    %418 = vmatpush1.msra.mxu0 %v288
    %419 = vmatprep.subr.mxu0 0.0
    %420 = vmatpush1.msra.mxu0 %v285
    %421 = vmatprep.subr.mxu0 0.0
    %422 = vmatpush1.msra.mxu0 %v282
    %423 = vmatprep.subr.mxu0 0.0
    %424 = vmatpush1.msra.mxu0 %v279
    %425 = vmatprep.subr.mxu0 0.0
    %426 = vmatpush1.msra.mxu0 %v276
    %427 = vmatprep.subr.mxu0 0.0
    %428 = vmatpush1.msra.mxu0 %v273
    %429 = vmatprep.subr.mxu0 0.0
    %430 = vmatpush1.msra.mxu0 %v270
    %431 = vmatprep.subr.mxu0 0.0
    %432 = vmatpush1.msra.mxu0 %v267
    %433 = vmatprep.subr.mxu0 0.0
    %434 = vmatpush2.msra.mxu0 0.0
    %435 = vmatprep.subr.mxu0 0.0
    %436 = vmatpush2.msra.mxu0 0.0
    %437 = vmatprep.subr.mxu0 0.0
    %438 = vmatpush2.msra.mxu0 0.0
    %439 = vmatprep.subr.mxu0 0.0
    %440 = vmatpush2.msra.mxu0 0.0
    %441 = vmatprep.subr.mxu0 0.0
    %442 = vmatpush2.msra.mxu0 0.0
    %443 = vmatprep.subr.mxu0 0.0
    %444 = vmatpush2.msra.mxu0 0.0
    %445 = vmatprep.subr.mxu0 0.0
    %446 = vmatpush2.msra.mxu0 0.0
    %447 = vmatprep.subr.mxu0 0.0
    %448 = vmatpush2.msra.mxu0 0.0
    %449 = vmatprep.subr.mxu0 0.0
    %450 = vmatpush2.msra.mxu0 0.0
    %451 = vmatprep.subr.mxu0 0.0
    %452 = vmatpush2.msra.mxu0 0.0
    %453 = vmatprep.subr.mxu0 0.0
    %454 = vmatpush2.msra.mxu0 0.0
    %455 = vmatprep.subr.mxu0 0.0
    %456 = vmatpush2.msra.mxu0 0.0
    %457 = vmatprep.subr.mxu0 0.0
    %458 = vmatpush2.msra.mxu0 0.0
    %459 = vmatprep.subr.mxu0 0.0
    %460 = vmatpush2.msra.mxu0 0.0
    %461 = vmatprep.subr.mxu0 0.0
    %462 = vmatpush2.msra.mxu0 0.0
    %463 = vmatprep.subr.mxu0 0.0
    %464 = vmatpush2.msra.mxu0 0.0
    %465 = vmatprep.mubr.f32.mxu0 0.0
    %466 = vmatmul.mubr.f32.gmra.mxu0 %v93
    %v467 = vpop.f32.mrf.mxu0
    %v468 = vadd.f32 %v326, %v467
    %v469 = vpop.f32.mrf.mxu0
    %470 = vdwg.mxu0
    %v471 = vmul.f32 %v94, 0.9
    %v472 = vmul.f32 %v95, 0.9
    %v473 = vmul.f32 %v96, 0.9
    %v474 = vmul.f32 %v191, 0.1
    %v475 = vmul.f32 %v193, 0.1
    %v476 = vmul.f32 %v262, 0.1
    %v477 = vadd.f32 %v471, %v474
    %v478 = vadd.f32 %v472, %v475
    %v479 = vadd.f32 %v473, %v476
    %v480 = vadd.f32 %v397, %v477
    %v481 = vadd.f32 %v399, %v478
    %v482 = vadd.f32 %v468, %v479
    %v483 = vadd.f32 %v191, %v480
    %v484 = vxor.u32 %v483, 2147483648
    %v485 = vmul.f32 %v484, 1.442695
    %v486 = vpow.pop %v485
    %v487 = vadd.f32 %v486, 1.0
    %v488 = vrcp.pop %v487
    %v489 = vmul.f32 1.0, %v488
    %v490 = vadd.f32 %v193, %v481
    %v491 = vxor.u32 %v490, 2147483648
    %v492 = vmul.f32 %v491, 1.442695
    %v493 = vpow.pop %v492
    %v494 = vadd.f32 %v493, 1.0
    %v495 = vrcp.pop %v494
    %v496 = vmul.f32 1.0, %v495
    %v497 = vmul.f32 %v489, %v482
    %v498 = vadd.f32 %v262, %v497
    %v499 = vtanh.pop %v498
    %v500 = vsub.f32 %v93, %v499
    %v501 = vmul.f32 %v496, %v500
    %v502 = vadd.f32 %v499, %v501
    %503 = vst [vmem:[#allocation11] sm:$0xff] %v502
    %504 = vst [vmem:[#allocation12] sm:$0xff] %v477
    %505 = vst [vmem:[#allocation12 + $0x8] sm:$0xff] %v478
    %506 = vst [vmem:[#allocation12 + $0x10] sm:$0xff] %v479
    // Predicated region
    $region50: #{tpu_custom_call.1} parent=1 // pred_check
      _
    $region51: #{tpu_custom_call.1} parent=1 // pred_check_branch
      %508 = sbr.rel (0) target = $region53
    $region52: #{tpu_custom_call.1} parent=1 // pred_region
      %s510 = ssub.s32 128, 128
      %511 = vsyncadd [#allocation4], %s510
      %s513 = sshll.u32 [#allocation11], 4
      %s514 = int_to_ptr.vmem [resolvable:$true] %s513
      %516 = dma.vmem_to_hbm [thread:$0]  %s514, 128, %s7, [#allocation4]
    $region53: #{tpu_custom_call.1} parent=1 // pred_fallthru
      _
    // Predicated region
    $region54: #{tpu_custom_call.1} parent=1 // pred_check
      _
    $region55: #{tpu_custom_call.1} parent=1 // pred_check_branch
      %518 = sbr.rel (0) target = $region57
    $region56: #{tpu_custom_call.1} parent=1 // pred_region
      %s520 = ssub.s32 384, 384
      %521 = vsyncadd [#allocation13], %s520
      %s523 = sshll.u32 [#allocation12], 4
      %s524 = int_to_ptr.vmem [resolvable:$true] %s523
      %526 = dma.vmem_to_hbm [thread:$0]  %s524, 384, %s8, [#allocation13]
    $region57: #{tpu_custom_call.1} parent=1 // pred_fallthru
      _
    // Predicated region
    $region58: #{tpu_custom_call.1} parent=1 // pred_check
      _
    $region59: #{tpu_custom_call.1} parent=1 // pred_check_branch
      %528 = sbr.rel (0) target = $region61
    $region60: #{tpu_custom_call.1} parent=1 // pred_region
      %529 = dma.done [#allocation4], 128
    $region61: #{tpu_custom_call.1} parent=1 // pred_fallthru
      _
    // Predicated region
    $region62: #{tpu_custom_call.1} parent=1 // pred_check
      _
    $region63: #{tpu_custom_call.1} parent=1 // pred_check_branch
      %531 = sbr.rel (0) target = $region65
    $region64: #{tpu_custom_call.1} parent=1 // pred_region
      %532 = dma.done [#allocation13], 384
    $region65: #{tpu_custom_call.1} parent=1 // pred_fallthru
      _
    %533 = vsyncpa [#allocation3], 1
    %534 = vsyncpa [#allocation6], 1
    %535 = vsyncpa [#allocation9], 1
    %536 = vsyncpa [#allocation4], 1
    %537 = vsyncpa [#allocation13], 1

</llo_original>
